<compile_context>
chip_gen: v7x
topology: tpu7x:2x2x1
jax: 0.10.0
libtpu: 0.0.40
codegen_flags: <defaults>
</compile_context>

<pallas_src>
import functools

import jax
import jax.numpy as jnp
import numpy as np
from jax.experimental import pallas as pl
from jax.experimental.pallas import tpu as pltpu


def _tv_loss_kernel(x_ref, h_ref, w_ref, *, W):
    # x_ref: (bc, H*W) block — each row is one full image, spatial dim on lanes.
    x = x_ref[...].astype(jnp.float32)

    # Width-direction neighbours: adjacent flat elements.  Pairs whose left
    # element sits in the last column cross an image-row boundary -> mask out.
    dw = x[:, 1:] - x[:, :-1]                                   # (bc, HW-1)
    col = jax.lax.broadcasted_iota(jnp.int32, dw.shape, 1) % W
    w_sq = jnp.where(col == W - 1, 0.0, dw * dw)

    # Height-direction neighbours: elements W apart in the flat layout; every
    # such pair is a valid vertical neighbour inside the same image.
    dh = x[:, W:] - x[:, :-W]                                   # (bc, HW-W)

    # Per-row partial sums (cheap lane-axis reduce); final reduction over the
    # N*C rows is done outside the kernel.
    h_ref[...] = jnp.sum(dh * dh, axis=1, keepdims=True)        # (bc, 1)
    w_ref[...] = jnp.sum(w_sq, axis=1, keepdims=True)           # (bc, 1)


def _pick_block_rows(nc, hw, itemsize, target_bytes):
    """Rows per block: a multiple of 8 (sublane tile) that divides nc, sized so
    one block is ~target_bytes.  Falls back to a single full block."""
    target = max(1, target_bytes // max(1, hw * itemsize))
    best = None
    for d in range(8, min(target, nc - 1) + 1, 8):
        if nc % d == 0:
            best = d
    # TODO(synk): if nc has no multiple-of-8 divisor <= target (e.g. prime nc),
    # we fall back to one full block, which may be large for very big inputs.
    return best if best is not None else nc


def tv_loss(x, weight=1.0, *, target_block_bytes=2 << 20):
    """Total-variation loss on an NCHW tensor, matching PyTorch TVLoss.forward."""
    N, C, H, W = x.shape
    NC, HW = N * C, H * W

    # Free reshape of contiguous NCHW data: (N, C, H, W) -> (N*C, H*W).
    x2 = x.reshape(NC, HW)
    bc = _pick_block_rows(NC, HW, x2.dtype.itemsize, target_block_bytes)
    grid = NC // bc

    h_rows, w_rows = pl.pallas_call(
        functools.partial(_tv_loss_kernel, W=W),
        out_shape=(
            jax.ShapeDtypeStruct((NC, 1), jnp.float32),
            jax.ShapeDtypeStruct((NC, 1), jnp.float32),
        ),
        grid_spec=pltpu.PrefetchScalarGridSpec(
            num_scalar_prefetch=0,
            grid=(grid,),
            in_specs=[pl.BlockSpec((bc, HW), lambda i: (i, 0))],
            out_specs=[
                pl.BlockSpec((bc, 1), lambda i: (i, 0)),
                pl.BlockSpec((bc, 1), lambda i: (i, 0)),
            ],
        ),
        compiler_params=pltpu.CompilerParams(
            dimension_semantics=("parallel",),
            vmem_limit_bytes=32 * 1024 * 1024,
        ),
    )(x2)

    h_tv = jnp.sum(h_rows)
    w_tv = jnp.sum(w_rows)
    count_h = C * (H - 1) * W
    count_w = C * H * (W - 1)
    return weight * 2.0 * (h_tv / count_h + w_tv / count_w) / N


def tv_loss_ref(x, weight=1.0):
    """Pure-JAX reference with the exact PyTorch TVLoss semantics."""
    N, C, H, W = x.shape
    count_h = C * (H - 1) * W
    count_w = C * H * (W - 1)
    h_tv = jnp.sum((x[:, :, 1:, :] - x[:, :, : H - 1, :]) ** 2)
    w_tv = jnp.sum((x[:, :, :, 1:] - x[:, :, :, : W - 1]) ** 2)
    return weight * 2.0 * (h_tv / count_h + w_tv / count_w) / N


if __name__ == "__main__":
    N, C, H, W = 2, 4, 16, 16
    key = jax.random.PRNGKey(0)
    x = jax.random.normal(key, (N, C, H, W), jnp.float32)

    out = jax.block_until_ready(tv_loss(x, weight=1.0))
    ref = jax.block_until_ready(tv_loss_ref(x, weight=1.0))

    np.testing.assert_allclose(np.asarray(out), np.asarray(ref),
                               rtol=1e-5, atol=1e-6)
    print("KERNEL_OK")
</pallas_src>

<mosaic_0001>
module attributes {stable_mosaic.version = 11 : i64} {
  func.func @_tv_loss_kernel(%arg0: i32, %arg1: memref<8x256xf32, #tpu.memory_space<vmem>>, %arg2: memref<8x1xf32, #tpu.memory_space<vmem>>, %arg3: memref<8x1xf32, #tpu.memory_space<vmem>>) attributes {dimension_semantics = [#tpu.dimension_semantics<parallel>], iteration_bounds = array<i64: 1>, scalar_prefetch = 0 : i64, scratch_operands = 0 : i64, tpu.core_type = #tpu.core_type<tc>, window_params = [{transform_indices = @transform_0, window_bounds = array<i64: 8, 256>}, {transform_indices = @transform_1, window_bounds = array<i64: 8, 1>}, {transform_indices = @transform_2, window_bounds = array<i64: 8, 1>}]} {
    %c0 = arith.constant 0 : index
    %c0_0 = arith.constant 0 : index
    %0 = vector.load %arg1[%c0, %c0_0] : memref<8x256xf32, #tpu.memory_space<vmem>>, vector<8x256xf32>
    %1 = vector.extract_strided_slice %0 {offsets = [0, 1], sizes = [8, 255], strides = [1, 1]} : vector<8x256xf32> to vector<8x255xf32>
    %2 = vector.extract_strided_slice %0 {offsets = [0, 0], sizes = [8, 255], strides = [1, 1]} : vector<8x256xf32> to vector<8x255xf32>
    %3 = arith.subf %1, %2 : vector<8x255xf32>
    %4 = tpu.iota {dimensions = array<i32: 1>} : vector<8x255xi32>
    %c16_i32 = arith.constant 16 : i32
    %c0_i32 = arith.constant 0 : i32
    %5 = arith.cmpi eq, %c16_i32, %c0_i32 : i32
    %c1_i32 = arith.constant 1 : i32
    %6 = arith.select %5, %c1_i32, %c16_i32 : i32
    %7 = vector.broadcast %6 : i32 to vector<8x255xi32>
    %8 = arith.remsi %4, %7 : vector<8x255xi32>
    %c0_i32_1 = arith.constant 0 : i32
    %9 = vector.broadcast %c0_i32_1 : i32 to vector<8x255xi32>
    %10 = arith.cmpi ne, %8, %9 : vector<8x255xi32>
    %c0_i32_2 = arith.constant 0 : i32
    %11 = vector.broadcast %c0_i32_2 : i32 to vector<8x255xi32>
    %12 = arith.cmpi slt, %8, %11 : vector<8x255xi32>
    %c0_i32_3 = arith.constant 0 : i32
    %13 = arith.cmpi slt, %6, %c0_i32_3 : i32
    %14 = vector.broadcast %13 : i1 to vector<8x255xi1>
    %15 = vector.broadcast %14 : vector<8x255xi1> to vector<8x255xi1>
    %16 = arith.xori %12, %15 : vector<8x255xi1>
    %17 = arith.andi %16, %10 : vector<8x255xi1>
    %18 = vector.broadcast %6 : i32 to vector<8x255xi32>
    %19 = arith.addi %8, %18 : vector<8x255xi32>
    %20 = arith.select %17, %19, %8 : vector<8x255xi1>, vector<8x255xi32>
    %c15_i32 = arith.constant 15 : i32
    %21 = vector.broadcast %c15_i32 : i32 to vector<8x255xi32>
    %22 = arith.cmpi eq, %20, %21 : vector<8x255xi32>
    %23 = arith.mulf %3, %3 : vector<8x255xf32>
    %cst = arith.constant 0.000000e+00 : f32
    %24 = vector.broadcast %cst : f32 to vector<8x255xf32>
    %25 = arith.select %22, %24, %23 : vector<8x255xi1>, vector<8x255xf32>
    %26 = vector.extract_strided_slice %0 {offsets = [0, 16], sizes = [8, 240], strides = [1, 1]} : vector<8x256xf32> to vector<8x240xf32>
    %27 = vector.extract_strided_slice %0 {offsets = [0, 0], sizes = [8, 240], strides = [1, 1]} : vector<8x256xf32> to vector<8x240xf32>
    %28 = arith.subf %26, %27 : vector<8x240xf32>
    %29 = arith.mulf %28, %28 : vector<8x240xf32>
    %cst_4 = arith.constant dense<0.000000e+00> : vector<8xf32>
    %30 = vector.multi_reduction <add>, %29, %cst_4 [1] : vector<8x240xf32> to vector<8xf32>
    %31 = vector.shape_cast %30 : vector<8xf32> to vector<8x1xf32>
    %c0_5 = arith.constant 0 : index
    %c0_6 = arith.constant 0 : index
    %32 = vector.load %arg2[%c0_5, %c0_6] : memref<8x1xf32, #tpu.memory_space<vmem>>, vector<8x1xf32>
    tpu.vector_store %arg2[%c0_5, %c0_6], %31 {strides = array<i32>} : memref<8x1xf32, #tpu.memory_space<vmem>>, vector<8x1xf32>,
    %cst_7 = arith.constant dense<0.000000e+00> : vector<8xf32>
    %33 = vector.multi_reduction <add>, %25, %cst_7 [1] : vector<8x255xf32> to vector<8xf32>
    %34 = vector.shape_cast %33 : vector<8xf32> to vector<8x1xf32>
    %c0_8 = arith.constant 0 : index
    %c0_9 = arith.constant 0 : index
    %35 = vector.load %arg3[%c0_8, %c0_9] : memref<8x1xf32, #tpu.memory_space<vmem>>, vector<8x1xf32>
    tpu.vector_store %arg3[%c0_8, %c0_9], %34 {strides = array<i32>} : memref<8x1xf32, #tpu.memory_space<vmem>>, vector<8x1xf32>,
    return
  }
  func.func @transform_0(%arg0: i32) -> (i32, i32) {
    %c0_i32 = arith.constant 0 : i32
    %c0_i32_0 = arith.constant 0 : i32
    return %arg0, %c0_i32 : i32, i32
  }
  func.func @transform_1(%arg0: i32) -> (i32, i32) {
    %c0_i32 = arith.constant 0 : i32
    %c0_i32_0 = arith.constant 0 : i32
    return %arg0, %c0_i32 : i32, i32
  }
  func.func @transform_2(%arg0: i32) -> (i32, i32) {
    %c0_i32 = arith.constant 0 : i32
    %c0_i32_0 = arith.constant 0 : i32
    return %arg0, %c0_i32 : i32, i32
  }
}

</mosaic_0001>

<llo_original>
// kernel: tpu_custom_call.1
$region0: #{tpu_custom_call.1}
  #allocation0 [shape = 'u32[]', space=smem, size = 0x4, offset = 0x4, fixed_abs, tag = 'smem constant byte address 0x4 - core index']
  #allocation1 [shape = 'u32[144,128]{1,0:T(1,128)}', space=vmem, size = 0x12000, scoped, tag = 'internal scratch']
  %s0 = inlined_call_operand.hbm [shape: f32[8,256], index: 0, kind: input, shape index: {}]
  %s1 = inlined_call_operand.vmem [shape: f32[8,1], index: 1, kind: output, shape index: {0}]
  %s2 = inlined_call_operand.vmem [shape: f32[8,1], index: 2, kind: output, shape index: {1}]
  %3 = xla_tuple %s1, %s2
  %s4 = sld [smem:[#allocation0]]
  $region26: #{tpu_custom_call.1} parent=0
    _
  %s6 = ssub.s32 1, %s4
  %s7 = scalar_select 0, %s6, %s4
  $region1: #{tpu_custom_call.1} parent=0
    #allocation2 [shape = 'u8[8192]{0}', space=vmem, size = 0x2000, scoped, tag = 'input window, operand 0, single buffered']
    #allocation3 [shape = 's32[1]{0}', space=sflag, size = 0x4, scoped, tag = 'scoped memory for tpu_custom_call.1']
    %8 = vsyncpa [#allocation3], 0
    // Predicated region
    $region2: #{tpu_custom_call.1} parent=1 // pred_check
      _
    $region3: #{tpu_custom_call.1} parent=1 // pred_check_branch
      %10 = sbr.rel (0) target = $region5
    $region4: #{tpu_custom_call.1} parent=1 // pred_region
      %s12 = ssub.s32 256, 256
      %13 = vsyncadd [#allocation3], %s12
      %s15 = sshll.u32 [#allocation2], 4
      %s16 = int_to_ptr.vmem [resolvable:$true] %s15
      %18 = dma.hbm_to_vmem [thread:$0]  %s0, 256, %s16, [#allocation3]
    $region5: #{tpu_custom_call.1} parent=1 // pred_fallthru
      _
    // Predicated region
    $region6: #{tpu_custom_call.1} parent=1 // pred_check
      _
    $region7: #{tpu_custom_call.1} parent=1 // pred_check_branch
      %20 = sbr.rel (0) target = $region9
    $region8: #{tpu_custom_call.1} parent=1 // pred_region
      %21 = dma.done [#allocation3], 256
    $region9: #{tpu_custom_call.1} parent=1 // pred_fallthru
      _
    %v22 = vld [vmem:[#allocation2] sm:$0xff]
    %v23 = vld [vmem:[#allocation2 + $0x8] sm:$0xff]
    %26 = vrot.lane.b32.xlu0 %v22, 1
    %v27 = vpop.permute.xlu0 %26
    %28 = vrot.lane.b32.xlu0 %v23, 1
    %v29 = vpop.permute.xlu0 %28
    %vm30 = vcmask 7168
    %v31 = vsel %vm30, %v27, %v29
    %v34 = vsub.f32 %v22, %v27
    %v35 = vsub.f32 %v23, %v31
    %v36 = vlaneseq
    %v37 = vand.u32 %v36, 127
    %v38 = vadd.s32 %v37, 128
    %vm39 = vcmp.lt.s32.totalorder %v37, 0
    %v40 = vsub.s32 0, %v37
    %v41 = vsel %vm39, %v40, %v37
    %v42 = vshrl.u32 %v41, 4
    %v43 = vand.u32 %v41, 15
    %v44 = vsub.s32 0, %v43
    %v45 = vsel %vm39, %v44, %v43
    %vm46 = vcmp.lt.s32.totalorder %v38, 0
    %v47 = vsub.s32 0, %v38
    %v48 = vsel %vm46, %v47, %v38
    %v49 = vshrl.u32 %v48, 4
    %v50 = vand.u32 %v48, 15
    %v51 = vsub.s32 0, %v50
    %v52 = vsel %vm46, %v51, %v50
    %vm53 = vcmp.ne.s32.totalorder %v45, 0
    %vm54 = vcmp.ne.s32.totalorder %v52, 0
    %vm55 = vcmp.lt.s32.totalorder %v45, 0
    %vm56 = vcmp.lt.s32.totalorder %v52, 0
    %vm57 = vmand %vm55, %vm53
    %vm58 = vmand %vm56, %vm54
    %v59 = vadd.s32 %v45, 16
    %v60 = vadd.s32 %v52, 16
    %v61 = vsel %vm57, %v59, %v45
    %v62 = vsel %vm58, %v60, %v52
    %vm63 = vcmp.eq.s32.totalorder %v61, 15
    %vm64 = vcmp.eq.s32.totalorder %v62, 15
    %v65 = vmul.f32 %v34, %v34
    %v66 = vmul.f32 %v35, %v35
    %69 = vrot.lane.b32.xlu0 %v65, 127
    %v70 = vpop.permute.xlu0 %69
    %71 = vrot.lane.b32.xlu0 %v66, 127
    %v72 = vpop.permute.xlu0 %71
    %vm73 = vcmask 1039360
    %v74 = vsel %vm73, %v70, %v72
    %v77 = vsel %vm63, 0.0, %v74
    %v78 = vsel %vm64, 0.0, %v72
    %79 = vrot.lane.b32.xlu0 %v22, 16
    %v80 = vpop.permute.xlu0 %79
    %81 = vrot.lane.b32.xlu0 %v23, 16
    %v82 = vpop.permute.xlu0 %81
    %vm83 = vcmask 130048
    %v84 = vsel %vm83, %v80, %v82
    %v87 = vsub.f32 %v22, %v80
    %v88 = vsub.f32 %v23, %v84
    %v89 = vmul.f32 %v87, %v87
    %v90 = vmul.f32 %v88, %v88
    %93 = vrot.lane.b32.xlu0 %v89, 112
    %v94 = vpop.permute.xlu0 %93
    %95 = vrot.lane.b32.xlu0 %v90, 112
    %v96 = vpop.permute.xlu0 %95
    %vm97 = vcmask 916480
    %v98 = vsel %vm97, %v94, %v96
    %v101 = vsel %vm97, %v96, 0.0
    %v102 = vadd.f32 %v98, %v101
    %103 = vadd.xlane.f32.xlu0 %v102
    %v104 = vpop.xlane.xlu0 %103
    %105 = vst.msk [vmem:[%s1] sm:$0xff] %vm30, %v104
    %v106 = vsel %vm73, %v78, 0.0
    %v107 = vadd.f32 %v77, %v106
    %108 = vadd.xlane.f32.xlu0 %v107
    %v109 = vpop.xlane.xlu0 %108
    %110 = vst.msk [vmem:[%s2] sm:$0xff] %vm30, %v109
    // Predicated region
    $region10: #{tpu_custom_call.1} parent=1 // pred_check
      _
    $region11: #{tpu_custom_call.1} parent=1 // pred_check_branch
      %112 = sbr.rel (0) target = $region13
    $region12: #{tpu_custom_call.1} parent=1 // pred_region
      _
    $region13: #{tpu_custom_call.1} parent=1 // pred_fallthru
      _
    // Predicated region
    $region14: #{tpu_custom_call.1} parent=1 // pred_check
      _
    $region15: #{tpu_custom_call.1} parent=1 // pred_check_branch
      %114 = sbr.rel (0) target = $region17
    $region16: #{tpu_custom_call.1} parent=1 // pred_region
      _
    $region17: #{tpu_custom_call.1} parent=1 // pred_fallthru
      _
    // Predicated region
    $region18: #{tpu_custom_call.1} parent=1 // pred_check
      _
    $region19: #{tpu_custom_call.1} parent=1 // pred_check_branch
      %116 = sbr.rel (0) target = $region21
    $region20: #{tpu_custom_call.1} parent=1 // pred_region
      _
    $region21: #{tpu_custom_call.1} parent=1 // pred_fallthru
      _
    // Predicated region
    $region22: #{tpu_custom_call.1} parent=1 // pred_check
      _
    $region23: #{tpu_custom_call.1} parent=1 // pred_check_branch
      %118 = sbr.rel (0) target = $region25
    $region24: #{tpu_custom_call.1} parent=1 // pred_region
      _
    $region25: #{tpu_custom_call.1} parent=1 // pred_fallthru
      _
    %119 = vsyncpa [#allocation3], 1

</llo_original>
